<compile_context>
chip_gen: v7x
topology: tpu7x:2x2x1
jax: 0.10.0
libtpu: 0.0.40
codegen_flags: <defaults>
</compile_context>

<pallas_src>
import numpy as np
import jax
import jax.numpy as jnp
from jax import lax
from jax.experimental import pallas as pl
from jax.experimental.pallas import tpu as pltpu


def _round_up(n, m):
    return ((n + m - 1) // m) * m


def _device_kind():
    try:
        return jax.devices()[0].device_kind.lower()
    except Exception:
        return ""


def _hw_info():
    """Returns (gene_pad_multiple, physical_vmem_bytes, tensorcores_per_chip, vmem_cap_bytes)."""
    kind = _device_kind()
    if "v7" in kind:
        phys, n_tc = 64 * 1024 * 1024, 2
    else:
        phys, n_tc = 128 * 1024 * 1024, 1
    try:
        q = int(pltpu.get_tpu_info().vmem_capacity_bytes)
        if q >= 32 * 1024 * 1024:
            phys = q
    except Exception:
        pass
    # gene (N) dimension alignment: 256-wide MXUs on v6e/v7x, 128-wide on v3/v4/v5e.
    mxu_128 = any(s in kind for s in ("v5 lite", "v5e", "v5litepod", "v4", "v3"))
    gene_mult = 128 if mxu_128 else 256
    # leave headroom for Mosaic internal scratch / semaphores (never claim all of v7x's VMEM)
    cap = min(phys - 16 * 1024 * 1024, int(phys * 0.78))
    cap = max(cap, 24 * 1024 * 1024)
    return gene_mult, phys, n_tc, cap


# --------------------- host-side packing (run once) ---------------------
def build_params(sub_w, sub_b, cut, edge_index, wl, bl, wr, W_out, b_out,
                 num_tf, compute_dtype=jnp.bfloat16):
    """One-time packing of all weights into padded, lane-dense device arrays."""
    G = len(sub_w)
    T = int(num_tf)
    P = int(cut[-1])
    K = T * P
    W_out_np = np.asarray(W_out, np.float32)
    O = int(W_out_np.shape[0])

    gene_mult, _, _, vmem_cap = _hw_info()
    G_pad = _round_up(G, gene_mult)
    O_pad = _round_up(O, 128)

    # K tile: as large as the per-step VMEM budget allows (target 2048-4096), assuming
    # tile_b up to 512 and double-buffered x (f32) + W_sub (bf16) streaming tiles.
    tile_k = min(4096, _round_up(K, 128))
    while tile_k > 512 and (2 * 512 * tile_k * 4 + 2 * tile_k * G_pad * 2) > 0.6 * vmem_cap:
        tile_k = _round_up(max(512, tile_k // 2), 128)
    K_pad = _round_up(K, tile_k)

    # Block-structured sub-net weight: W_sub[tf*P + (cut[i]+p), i] = fc1_i.weight[0, tf*Pi + p]
    W_sub_np = np.zeros((T, P, G_pad), np.float32)
    b_sub_np = np.zeros((1, G_pad), np.float32)
    for i in range(G):
        W_sub_np[:, int(cut[i]):int(cut[i + 1]), i] = np.asarray(sub_w[i], np.float32)
        b_sub_np[0, i] = float(sub_b[i])
    W_sub_pad = np.zeros((K_pad, G_pad), np.float32)
    W_sub_pad[:K] = W_sub_np.reshape(K, G_pad)

    # Mean-aggregation matrix (transposed), zero-padded: agg[:, t] = mean_{s in N(t)} x[:, s]
    src, tgt = np.asarray(edge_index)
    A = np.zeros((G_pad, G_pad), np.float32)
    for s, t in zip(src, tgt):
        A[int(t), int(s)] += 1.0
    deg = A.sum(axis=1, keepdims=True)
    A = np.where(deg > 0, A / np.maximum(deg, 1.0), 0.0).astype(np.float32)
    A_T = np.ascontiguousarray(A.T)

    # Fused output weights: torch flattens (B, G, 2) -> (B, 2G) as [g0c0, g0c1, g1c0, ...].
    # Split per channel so the kernel does two dots instead of a concatenate.
    W0 = np.zeros((G_pad, O_pad), np.float32)
    W1 = np.zeros((G_pad, O_pad), np.float32)
    W0[:G, :O] = W_out_np[:, 0::2].T
    W1[:G, :O] = W_out_np[:, 1::2].T
    b_out_pad = np.zeros((1, O_pad), np.float32)
    b_out_pad[0, :O] = np.asarray(b_out, np.float32).reshape(-1)

    # SAGEConv scalars, rows = [wl, bl, wr], columns = channel.
    sage = np.stack([np.asarray(wl, np.float32).reshape(-1),
                     np.asarray(bl, np.float32).reshape(-1),
                     np.asarray(wr, np.float32).reshape(-1)], axis=0)    # (3, 2)

    params = dict(
        w_sub=jnp.asarray(W_sub_pad, compute_dtype),   # bf16 (MXU operand)
        b_sub=jnp.asarray(b_sub_np),                   # f32
        a_t=jnp.asarray(A_T),                          # f32 (exact mean aggregation)
        sage=jnp.asarray(sage),                        # f32, SMEM
        w_out0=jnp.asarray(W0, compute_dtype),         # bf16
        w_out1=jnp.asarray(W1, compute_dtype),         # bf16
        b_out=jnp.asarray(b_out_pad),                  # f32
    )
    cfg = dict(G=G, O=O, K=K, T=T, P=P, G_pad=G_pad, O_pad=O_pad,
               K_pad=K_pad, tile_k=tile_k, compute_dtype=compute_dtype)
    return params, cfg


def make_forward(params, cfg):
    """Build a jitted forward(x) -> (B, num_output) for fixed packed params."""
    cd = cfg["compute_dtype"]
    tile_k = cfg["tile_k"]
    K_pad = cfg["K_pad"]
    G_pad = cfg["G_pad"]
    O_pad = cfg["O_pad"]
    O = cfg["O"]
    K = cfg["K"]
    need_mask = (K % tile_k) != 0
    _, _, n_tc, vmem_cap = _hw_info()

    # ----------------------------- kernel -----------------------------
    def kernel(x_ref, wsub_ref, bsub_ref, at_ref, sage_ref,
               wo0_ref, wo1_ref, bo_ref, out_ref, acc_ref):
        k = pl.program_id(1)

        @pl.when(k == 0)
        def _init():
            acc_ref[...] = jnp.zeros_like(acc_ref)

        # K-tiled fused per-gene sub-networks; x arrives as f32 (no host pad/cast pass),
        # is masked on the K remainder (neutralizes OOB garbage of the partial last tile)
        # and cast to bf16 in-kernel.  f32 accumulation on the MXU.
        xv = x_ref[...]
        if need_mask:
            col = lax.broadcasted_iota(jnp.int32, xv.shape, 1) + k * tile_k
            xv = jnp.where(col < K, xv, 0.0)
        acc_ref[...] += jnp.dot(xv.astype(cd), wsub_ref[...],
                                preferred_element_type=jnp.float32)

        @pl.when(k == pl.num_programs(1) - 1)
        def _finalize():
            # Hoisted scalar reads (SAGEConv lin_l / lin_r params, gene_dim = 2).
            wl0 = sage_ref[0, 0]
            wl1 = sage_ref[0, 1]
            bl0 = sage_ref[1, 0]
            bl1 = sage_ref[1, 1]
            wr0 = sage_ref[2, 0]
            wr1 = sage_ref[2, 1]

            # cat_activate = ReLU over the concatenated per-gene outputs.
            x_cat = jnp.maximum(acc_ref[...] + bsub_ref[...], 0.0)          # (TB, G_pad) f32

            # SAGEConv mean neighbor aggregation, kept in f32 (off the K critical path).
            agg = jnp.dot(x_cat, at_ref[...],
                          preferred_element_type=jnp.float32)               # (TB, G_pad) f32

            # lin_l(agg) + lin_r(x) per output channel, then conv_activate = ReLU.
            h0 = jnp.maximum(wl0 * agg + bl0 + wr0 * x_cat, 0.0)
            h1 = jnp.maximum(wl1 * agg + bl1 + wr1 * x_cat, 0.0)

            # Output head: two accumulating MXU dots (no concatenate / relayout), + bias.
            out = jnp.dot(h0.astype(cd), wo0_ref[...],
                          preferred_element_type=jnp.float32)
            out = out + jnp.dot(h1.astype(cd), wo1_ref[...],
                                preferred_element_type=jnp.float32)
            out_ref[...] = out + bo_ref[...]

    def _forward(x, p):
        B = x.shape[0]
        assert x.shape[1] * x.shape[2] == K
        x_flat = x.reshape(B, K)                     # metadata-only reshape; no pad, no cast

        # ---- batch tile: large for W_sub reuse; >= 2 tiles so both v7x cores get work ----
        B8 = _round_up(B, 8)
        tile_b = min(512, B8)
        if n_tc > 1 and B8 > 8:
            tile_b = min(tile_b, _round_up(-(-B8 // n_tc), 8))

        def footprint(tb):
            stream = 2 * (tb * tile_k * 4 + tile_k * G_pad * 2 + tb * O_pad * 4)
            consts = 2 * (G_pad * G_pad * 4 + 2 * G_pad * O_pad * 2 + G_pad * 4 + O_pad * 4)
            return stream + consts + tb * G_pad * 4            # + f32 accumulator scratch

        while footprint(tile_b) > 0.85 * vmem_cap and tile_b > 64:
            tile_b = _round_up(max(64, tile_b // 2), 8)

        vmem_limit = int(min(vmem_cap,
                             max(16 * 1024 * 1024,
                                 1.4 * footprint(tile_b) + 4 * 1024 * 1024)))

        grid = (pl.cdiv(B, tile_b), K_pad // tile_k)

        out = pl.pallas_call(
            kernel,
            out_shape=jax.ShapeDtypeStruct((B, O_pad), jnp.float32),
            grid_spec=pltpu.PrefetchScalarGridSpec(
                num_scalar_prefetch=0,
                grid=grid,
                in_specs=[
                    pl.BlockSpec((tile_b, tile_k), lambda b, k: (b, k)),     # x tile (f32)
                    pl.BlockSpec((tile_k, G_pad), lambda b, k: (k, 0)),      # W_sub tile (bf16)
                    pl.BlockSpec((1, G_pad), lambda b, k: (0, 0)),           # b_sub
                    pl.BlockSpec((G_pad, G_pad), lambda b, k: (0, 0)),       # A^T (f32)
                    pl.BlockSpec(memory_space=pltpu.MemorySpace.SMEM),       # SAGE scalars
                    pl.BlockSpec((G_pad, O_pad), lambda b, k: (0, 0)),       # W_out channel 0
                    pl.BlockSpec((G_pad, O_pad), lambda b, k: (0, 0)),       # W_out channel 1
                    pl.BlockSpec((1, O_pad), lambda b, k: (0, 0)),           # b_out
                ],
                out_specs=pl.BlockSpec((tile_b, O_pad), lambda b, k: (b, 0)),
                scratch_shapes=[pltpu.VMEM((tile_b, G_pad), jnp.float32)],
            ),
            compiler_params=pltpu.CompilerParams(
                dimension_semantics=("parallel", "arbitrary"),
                vmem_limit_bytes=vmem_limit,
            ),
        )(x_flat, p["w_sub"], p["b_sub"], p["a_t"], p["sage"],
          p["w_out0"], p["w_out1"], p["b_out"])

        return out[:, :O]

    fwd = jax.jit(_forward)
    return lambda x: fwd(x, params)


# ----------------------------- reference -----------------------------
def reference_forward(x, sub_w, sub_b, cut, edge_index, wl, bl, wr, W_out, b_out):
    """Pure numpy replica of the PyTorch forward pass (f32)."""
    x = np.asarray(x, np.float32)
    B = x.shape[0]
    G = len(sub_w)
    cols = []
    for i in range(G):
        x_sub = x[:, :, cut[i]:cut[i + 1]].reshape(B, -1)          # (B, T*Pi), tf-major
        w = np.asarray(sub_w[i], np.float32).reshape(-1)           # fc1 weight row
        cols.append(x_sub @ w + float(sub_b[i]))
    x_cat = np.maximum(np.stack(cols, axis=1), 0.0)                # (B, G), cat_activate
    src, tgt = np.asarray(edge_index)
    A = np.zeros((G, G), np.float32)
    for s, t in zip(src, tgt):
        A[t, s] += 1.0
    deg = A.sum(axis=1, keepdims=True)
    A = np.where(deg > 0, A / np.maximum(deg, 1.0), 0.0)
    agg = x_cat @ A.T                                              # mean aggregation
    wl = np.asarray(wl); bl = np.asarray(bl); wr = np.asarray(wr)
    h = agg[:, :, None] * wl[None, None, :] + bl[None, None, :] \
        + x_cat[:, :, None] * wr[None, None, :]                    # (B, G, 2)
    h = np.maximum(h, 0.0).reshape(B, -1)                          # (B, 2G) interleaved
    return h @ np.asarray(W_out, np.float32).T + np.asarray(b_out, np.float32)


if __name__ == "__main__":
    key = jax.random.PRNGKey(0)
    keys = jax.random.split(key, 8)

    B = 8
    num_tf = 4
    num_genes = 8
    num_output = 3
    num_peaks = [3, 2, 4, 3, 2, 3, 4, 3]
    cut = np.concatenate([[0], np.cumsum(num_peaks)]).astype(np.int32)
    total_peaks = int(cut[-1])

    # undirected ring graph over genes; PyG edge_index layout (2, E): row0 = src, row1 = tgt
    ring = np.arange(num_genes)
    src = np.concatenate([ring, (ring + 1) % num_genes])
    tgt = np.concatenate([(ring + 1) % num_genes, ring])
    edge_index = np.stack([src, tgt]).astype(np.int32)

    # input TAM: (batch, TF, cCRE)
    x = jax.random.normal(keys[0], (B, num_tf, total_peaks), jnp.float32)

    # per-gene fc1 parameters: weight (num_tf, num_peaks[i]), scalar bias
    sub_w, sub_b = [], []
    for i in range(num_genes):
        kw = jax.random.fold_in(keys[1], i)
        kb = jax.random.fold_in(keys[2], i)
        sub_w.append(np.asarray(jax.random.normal(kw, (num_tf, num_peaks[i]), jnp.float32)) * 0.1)
        sub_b.append(float(jax.random.normal(kb, (), jnp.float32)) * 0.1)

    # SAGEConv(1, 2) params: lin_l weight (2,1)+bias(2,), lin_r weight (2,1) no bias
    wl = jax.random.uniform(keys[3], (2,), jnp.float32, 0.1, 2.1)   # constant init in [0.1, 2.1)
    bl = jnp.zeros((2,), jnp.float32)
    wr = jax.random.uniform(keys[4], (2,), jnp.float32, 0.1, 2.1)

    # output linear: (num_output, num_genes*gene_dim)
    W_out = jax.random.normal(keys[5], (num_output, num_genes * 2), jnp.float32) * 0.1
    b_out = jax.random.normal(keys[6], (num_output,), jnp.float32) * 0.1

    # one-time host-side packing + jitted forward
    params, cfg = build_params(sub_w, sub_b, cut, edge_index, wl, bl, wr,
                               W_out, b_out, num_tf)
    forward = make_forward(params, cfg)

    y = forward(x)
    y = jax.block_until_ready(y)

    y_ref = reference_forward(np.asarray(x), sub_w, sub_b, cut, edge_index,
                              np.asarray(wl), np.asarray(bl), np.asarray(wr),
                              np.asarray(W_out), np.asarray(b_out))
    # bf16 operands on the big matmul / head (f32 accumulation) => loosened tolerance.
    np.testing.assert_allclose(np.asarray(y), y_ref, rtol=3e-2, atol=3e-2)
    print("KERNEL_OK")
</pallas_src>

<mosaic_0001>
module attributes {stable_mosaic.version = 11 : i64} {
  func.func @kernel(%arg0: i32, %arg1: i32, %arg2: memref<8x128xf32, #tpu.memory_space<vmem>>, %arg3: memref<128x256xbf16, #tpu.memory_space<vmem>>, %arg4: memref<1x256xf32, #tpu.memory_space<vmem>>, %arg5: memref<256x256xf32, #tpu.memory_space<vmem>>, %arg6: memref<3x2xf32, #tpu.memory_space<smem>>, %arg7: memref<256x128xbf16, #tpu.memory_space<vmem>>, %arg8: memref<256x128xbf16, #tpu.memory_space<vmem>>, %arg9: memref<1x128xf32, #tpu.memory_space<vmem>>, %arg10: memref<8x128xf32, #tpu.memory_space<vmem>>, %arg11: memref<8x256xf32, #tpu.memory_space<vmem>>) attributes {dimension_semantics = [#tpu.dimension_semantics<parallel>, #tpu.dimension_semantics<arbitrary>], iteration_bounds = array<i64: 1, 1>, scalar_prefetch = 0 : i64, scratch_operands = 1 : i64, tpu.core_type = #tpu.core_type<tc>, window_params = [{transform_indices = @transform_0, window_bounds = array<i64: 8, 128>}, {transform_indices = @transform_1, window_bounds = array<i64: 128, 256>}, {pipeline_mode = #tpu.pipeline_mode<synchronous>, transform_indices = @transform_2, window_bounds = array<i64: 1, 256>}, {pipeline_mode = #tpu.pipeline_mode<synchronous>, transform_indices = @transform_3, window_bounds = array<i64: 256, 256>}, {transform_indices = @transform_4, window_bounds = array<i64: 3, 2>}, {pipeline_mode = #tpu.pipeline_mode<synchronous>, transform_indices = @transform_5, window_bounds = array<i64: 256, 128>}, {pipeline_mode = #tpu.pipeline_mode<synchronous>, transform_indices = @transform_6, window_bounds = array<i64: 256, 128>}, {pipeline_mode = #tpu.pipeline_mode<synchronous>, transform_indices = @transform_7, window_bounds = array<i64: 1, 128>}, {transform_indices = @transform_8, window_bounds = array<i64: 8, 128>}]} {
    %c0_i32 = arith.constant 0 : i32
    %0 = arith.cmpi eq, %arg1, %c0_i32 : i32
    %1 = arith.extui %0 : i1 to i32
    %c0_i32_0 = arith.constant 0 : i32
    %2 = arith.cmpi ne, %1, %c0_i32_0 : i32
    scf.if %2 {
      %cst_11 = arith.constant 0.000000e+00 : f32
      %21 = vector.broadcast %cst_11 : f32 to vector<8x256xf32>
      %c0_12 = arith.constant 0 : index
      %c0_13 = arith.constant 0 : index
      %22 = vector.load %arg11[%c0_12, %c0_13] : memref<8x256xf32, #tpu.memory_space<vmem>>, vector<8x256xf32>
      tpu.vector_store %arg11[%c0_12, %c0_13], %21 {strides = array<i32>} : memref<8x256xf32, #tpu.memory_space<vmem>>, vector<8x256xf32>,
    } else {
    }
    %c0 = arith.constant 0 : index
    %c0_1 = arith.constant 0 : index
    %3 = vector.load %arg2[%c0, %c0_1] : memref<8x128xf32, #tpu.memory_space<vmem>>, vector<8x128xf32>
    %4 = tpu.iota {dimensions = array<i32: 1>} : vector<8x128xi32>
    %c128_i32 = arith.constant 128 : i32
    %5 = arith.muli %arg1, %c128_i32 : i32
    %6 = vector.broadcast %5 : i32 to vector<8x128xi32>
    %7 = arith.addi %4, %6 : vector<8x128xi32>
    %c96_i32 = arith.constant 96 : i32
    %8 = vector.broadcast %c96_i32 : i32 to vector<8x128xi32>
    %9 = arith.cmpi slt, %7, %8 : vector<8x128xi32>
    %cst = arith.constant 0.000000e+00 : f32
    %10 = vector.broadcast %cst : f32 to vector<8x128xf32>
    %11 = arith.select %9, %3, %10 : vector<8x128xi1>, vector<8x128xf32>
    %c0_2 = arith.constant 0 : index
    %c0_3 = arith.constant 0 : index
    %12 = vector.load %arg11[%c0_2, %c0_3] : memref<8x256xf32, #tpu.memory_space<vmem>>, vector<8x256xf32>
    %13 = arith.truncf %11 : vector<8x128xf32> to vector<8x128xbf16>
    %c0_4 = arith.constant 0 : index
    %c0_5 = arith.constant 0 : index
    %14 = vector.load %arg3[%c0_4, %c0_5] : memref<128x256xbf16, #tpu.memory_space<vmem>>, vector<128x256xbf16>
    %cst_6 = arith.constant dense<0.000000e+00> : vector<8x256xf32>
    %15 = tpu.matmul %13, %14, %cst_6 {dimension_numbers = #tpu.dot_dimension_numbers<[1], [0], [0], [1], [0, 0, 1, 1], [], []>} : vector<8x128xbf16>, vector<128x256xbf16>, vector<8x256xf32> -> vector<8x256xf32>
    %16 = arith.addf %12, %15 : vector<8x256xf32>
    %c0_7 = arith.constant 0 : index
    %c0_8 = arith.constant 0 : index
    %17 = vector.load %arg11[%c0_7, %c0_8] : memref<8x256xf32, #tpu.memory_space<vmem>>, vector<8x256xf32>
    tpu.vector_store %arg11[%c0_7, %c0_8], %16 {strides = array<i32>} : memref<8x256xf32, #tpu.memory_space<vmem>>, vector<8x256xf32>,
    %c0_i32_9 = arith.constant 0 : i32
    %18 = arith.cmpi eq, %arg1, %c0_i32_9 : i32
    %19 = arith.extui %18 : i1 to i32
    %c0_i32_10 = arith.constant 0 : i32
    %20 = arith.cmpi ne, %19, %c0_i32_10 : i32
    scf.if %20 {
      %c0_11 = arith.constant 0 : index
      %c0_12 = arith.constant 0 : index
      %21 = memref.load %arg6[%c0_11, %c0_12] : memref<3x2xf32, #tpu.memory_space<smem>>
      %c0_13 = arith.constant 0 : index
      %c1 = arith.constant 1 : index
      %22 = memref.load %arg6[%c0_13, %c1] : memref<3x2xf32, #tpu.memory_space<smem>>
      %c1_14 = arith.constant 1 : index
      %c0_15 = arith.constant 0 : index
      %23 = memref.load %arg6[%c1_14, %c0_15] : memref<3x2xf32, #tpu.memory_space<smem>>
      %c1_16 = arith.constant 1 : index
      %c1_17 = arith.constant 1 : index
      %24 = memref.load %arg6[%c1_16, %c1_17] : memref<3x2xf32, #tpu.memory_space<smem>>
      %c2 = arith.constant 2 : index
      %c0_18 = arith.constant 0 : index
      %25 = memref.load %arg6[%c2, %c0_18] : memref<3x2xf32, #tpu.memory_space<smem>>
      %c2_19 = arith.constant 2 : index
      %c1_20 = arith.constant 1 : index
      %26 = memref.load %arg6[%c2_19, %c1_20] : memref<3x2xf32, #tpu.memory_space<smem>>
      %c0_21 = arith.constant 0 : index
      %c0_22 = arith.constant 0 : index
      %27 = vector.load %arg11[%c0_21, %c0_22] : memref<8x256xf32, #tpu.memory_space<vmem>>, vector<8x256xf32>
      %c0_23 = arith.constant 0 : index
      %c0_24 = arith.constant 0 : index
      %28 = vector.load %arg4[%c0_23, %c0_24] : memref<1x256xf32, #tpu.memory_space<vmem>>, vector<1x256xf32>
      %29 = vector.broadcast %28 : vector<1x256xf32> to vector<8x256xf32>
      %30 = arith.addf %27, %29 : vector<8x256xf32>
      %cst_25 = arith.constant 0.000000e+00 : f32
      %31 = vector.broadcast %cst_25 : f32 to vector<8x256xf32>
      %32 = arith.maximumf %30, %31 : vector<8x256xf32>
      %c0_26 = arith.constant 0 : index
      %c0_27 = arith.constant 0 : index
      %33 = vector.load %arg5[%c0_26, %c0_27] : memref<256x256xf32, #tpu.memory_space<vmem>>, vector<256x256xf32>
      %cst_28 = arith.constant dense<0.000000e+00> : vector<8x256xf32>
      %34 = tpu.matmul %32, %33, %cst_28 {dimension_numbers = #tpu.dot_dimension_numbers<[1], [0], [0], [1], [0, 0, 1, 1], [], []>} : vector<8x256xf32>, vector<256x256xf32>, vector<8x256xf32> -> vector<8x256xf32>
      %35 = vector.broadcast %21 : f32 to vector<8x256xf32>
      %36 = arith.mulf %35, %34 : vector<8x256xf32>
      %37 = vector.broadcast %23 : f32 to vector<8x256xf32>
      %38 = arith.addf %36, %37 : vector<8x256xf32>
      %39 = vector.broadcast %25 : f32 to vector<8x256xf32>
      %40 = arith.mulf %39, %32 : vector<8x256xf32>
      %41 = arith.addf %38, %40 : vector<8x256xf32>
      %cst_29 = arith.constant 0.000000e+00 : f32
      %42 = vector.broadcast %cst_29 : f32 to vector<8x256xf32>
      %43 = arith.maximumf %41, %42 : vector<8x256xf32>
      %44 = vector.broadcast %22 : f32 to vector<8x256xf32>
      %45 = arith.mulf %44, %34 : vector<8x256xf32>
      %46 = vector.broadcast %24 : f32 to vector<8x256xf32>
      %47 = arith.addf %45, %46 : vector<8x256xf32>
      %48 = vector.broadcast %26 : f32 to vector<8x256xf32>
      %49 = arith.mulf %48, %32 : vector<8x256xf32>
      %50 = arith.addf %47, %49 : vector<8x256xf32>
      %cst_30 = arith.constant 0.000000e+00 : f32
      %51 = vector.broadcast %cst_30 : f32 to vector<8x256xf32>
      %52 = arith.maximumf %50, %51 : vector<8x256xf32>
      %53 = arith.truncf %43 : vector<8x256xf32> to vector<8x256xbf16>
      %c0_31 = arith.constant 0 : index
      %c0_32 = arith.constant 0 : index
      %54 = vector.load %arg7[%c0_31, %c0_32] : memref<256x128xbf16, #tpu.memory_space<vmem>>, vector<256x128xbf16>
      %cst_33 = arith.constant dense<0.000000e+00> : vector<8x128xf32>
      %55 = tpu.matmul %53, %54, %cst_33 {dimension_numbers = #tpu.dot_dimension_numbers<[1], [0], [0], [1], [0, 0, 1, 1], [], []>} : vector<8x256xbf16>, vector<256x128xbf16>, vector<8x128xf32> -> vector<8x128xf32>
      %56 = arith.truncf %52 : vector<8x256xf32> to vector<8x256xbf16>
      %c0_34 = arith.constant 0 : index
      %c0_35 = arith.constant 0 : index
      %57 = vector.load %arg8[%c0_34, %c0_35] : memref<256x128xbf16, #tpu.memory_space<vmem>>, vector<256x128xbf16>
      %cst_36 = arith.constant dense<0.000000e+00> : vector<8x128xf32>
      %58 = tpu.matmul %56, %57, %cst_36 {dimension_numbers = #tpu.dot_dimension_numbers<[1], [0], [0], [1], [0, 0, 1, 1], [], []>} : vector<8x256xbf16>, vector<256x128xbf16>, vector<8x128xf32> -> vector<8x128xf32>
      %59 = arith.addf %55, %58 : vector<8x128xf32>
      %c0_37 = arith.constant 0 : index
      %c0_38 = arith.constant 0 : index
      %60 = vector.load %arg9[%c0_37, %c0_38] : memref<1x128xf32, #tpu.memory_space<vmem>>, vector<1x128xf32>
      %61 = vector.broadcast %60 : vector<1x128xf32> to vector<8x128xf32>
      %62 = arith.addf %59, %61 : vector<8x128xf32>
      %c0_39 = arith.constant 0 : index
      %c0_40 = arith.constant 0 : index
      %63 = vector.load %arg10[%c0_39, %c0_40] : memref<8x128xf32, #tpu.memory_space<vmem>>, vector<8x128xf32>
      tpu.vector_store %arg10[%c0_39, %c0_40], %62 {strides = array<i32>} : memref<8x128xf32, #tpu.memory_space<vmem>>, vector<8x128xf32>,
    } else {
    }
    return
  }
  func.func @transform_0(%arg0: i32, %arg1: i32) -> (i32, i32) {
    %c0_i32 = arith.constant 0 : i32
    return %arg0, %arg1 : i32, i32
  }
  func.func @transform_1(%arg0: i32, %arg1: i32) -> (i32, i32) {
    %c0_i32 = arith.constant 0 : i32
    %c0_i32_0 = arith.constant 0 : i32
    return %arg1, %c0_i32 : i32, i32
  }
  func.func @transform_2(%arg0: i32, %arg1: i32) -> (i32, i32) {
    %c0_i32 = arith.constant 0 : i32
    %c0_i32_0 = arith.constant 0 : i32
    %c0_i32_1 = arith.constant 0 : i32
    return %c0_i32, %c0_i32_0 : i32, i32
  }
  func.func @transform_3(%arg0: i32, %arg1: i32) -> (i32, i32) {
    %c0_i32 = arith.constant 0 : i32
    %c0_i32_0 = arith.constant 0 : i32
    %c0_i32_1 = arith.constant 0 : i32
    return %c0_i32, %c0_i32_0 : i32, i32
  }
  func.func @transform_4(%arg0: i32, %arg1: i32) -> (i32, i32) {
    %c0_i32 = arith.constant 0 : i32
    %c0_i32_0 = arith.constant 0 : i32
    %c0_i32_1 = arith.constant 0 : i32
    return %c0_i32, %c0_i32_0 : i32, i32
  }
  func.func @transform_5(%arg0: i32, %arg1: i32) -> (i32, i32) {
    %c0_i32 = arith.constant 0 : i32
    %c0_i32_0 = arith.constant 0 : i32
    %c0_i32_1 = arith.constant 0 : i32
    return %c0_i32, %c0_i32_0 : i32, i32
  }
  func.func @transform_6(%arg0: i32, %arg1: i32) -> (i32, i32) {
    %c0_i32 = arith.constant 0 : i32
    %c0_i32_0 = arith.constant 0 : i32
    %c0_i32_1 = arith.constant 0 : i32
    return %c0_i32, %c0_i32_0 : i32, i32
  }
  func.func @transform_7(%arg0: i32, %arg1: i32) -> (i32, i32) {
    %c0_i32 = arith.constant 0 : i32
    %c0_i32_0 = arith.constant 0 : i32
    %c0_i32_1 = arith.constant 0 : i32
    return %c0_i32, %c0_i32_0 : i32, i32
  }
  func.func @transform_8(%arg0: i32, %arg1: i32) -> (i32, i32) {
    %c0_i32 = arith.constant 0 : i32
    %c0_i32_0 = arith.constant 0 : i32
    return %arg0, %c0_i32 : i32, i32
  }
}

</mosaic_0001>

<llo_original>
// kernel: _forward.1
$region0: #{_forward.1}
  #allocation0 [shape = 'u32[]', space=smem, size = 0x4, offset = 0x4, fixed_abs, tag = 'smem constant byte address 0x4 - core index']
  #allocation1 [shape = 'u32[144,128]{1,0:T(1,128)}', space=vmem, size = 0x12000, scoped, tag = 'internal scratch']
  #allocation2 [shape = 'f32[8,256]{1,0:T(8,128)}', space=vmem, size = 0x2000, scoped, tag = 'scratch operand']
  %s0 = inlined_call_operand.vmem [shape: f32[8,96], index: 0, kind: input, shape index: {}]
  %s1 = inlined_call_operand.hbm [shape: bf16[128,256], index: 1, kind: input, shape index: {}]
  %s2 = inlined_call_operand.vmem [shape: f32[1,256], index: 2, kind: input, shape index: {}]
  %s3 = inlined_call_operand.hbm [shape: f32[256,256], index: 3, kind: input, shape index: {}]
  %s4 = inlined_call_operand.vmem [shape: f32[3,2], index: 4, kind: input, shape index: {}]
  %s5 = inlined_call_operand.hbm [shape: bf16[256,128], index: 5, kind: input, shape index: {}]
  %s6 = inlined_call_operand.hbm [shape: bf16[256,128], index: 6, kind: input, shape index: {}]
  %s7 = inlined_call_operand.vmem [shape: f32[1,128], index: 7, kind: input, shape index: {}]
  %s8 = inlined_call_operand.vmem [shape: f32[8,128], index: 8, kind: output, shape index: {}]
  %s9 = sld [smem:[#allocation0]]
  $region70: #{_forward.1} parent=0
    _
  %s11 = ssub.s32 1, %s9
  %s12 = scalar_select 0, %s11, %s9
  $region1: #{_forward.1} parent=0
    #allocation3 [shape = 'u8[65536]{0}', space=vmem, size = 0x10000, scoped, tag = 'input window, operand 1, single buffered']
    #allocation4 [shape = 's32[1]{0}', space=sflag, size = 0x4, scoped, tag = 'scoped memory for _forward.1']
    #allocation5 [shape = 's32[1]{0}', space=sflag, size = 0x4, scoped, tag = 'scoped memory for _forward.1']
    #allocation6 [shape = 'u8[262144]{0}', space=vmem, size = 0x40000, scoped, tag = 'input window, operand 3, single buffered']
    #allocation7 [shape = 's32[1]{0}', space=sflag, size = 0x4, scoped, tag = 'scoped memory for _forward.1']
    #allocation8 [shape = 'u8[2048]{0}', space=smem, size = 0x800, scoped, tag = 'input window, operand 4, single buffered']
    #allocation9 [shape = 'u8[65536]{0}', space=vmem, size = 0x10000, scoped, tag = 'input window, operand 5, single buffered']
    #allocation10 [shape = 'u8[65536]{0}', space=vmem, size = 0x10000, scoped, tag = 'input window, operand 6, single buffered']
    #allocation11 [shape = 's32[1]{0}', space=sflag, size = 0x4, scoped, tag = 'scoped memory for _forward.1']
    %13 = vsyncpa [#allocation4], 0
    %14 = vsyncpa [#allocation7], 0
    %15 = vsyncpa [#allocation5], 0
    %16 = vsyncpa [#allocation11], 0
    // Predicated region
    $region2: #{_forward.1} parent=1 // pred_check
      _
    $region3: #{_forward.1} parent=1 // pred_check_branch
      %18 = sbr.rel (0) target = $region5
    $region4: #{_forward.1} parent=1 // pred_region
      _
    $region5: #{_forward.1} parent=1 // pred_fallthru
      _
    // Predicated region
    $region6: #{_forward.1} parent=1 // pred_check
      _
    $region7: #{_forward.1} parent=1 // pred_check_branch
      %20 = sbr.rel (0) target = $region9
    $region8: #{_forward.1} parent=1 // pred_region
      %s22 = ssub.s32 2048, 2048
      %23 = vsyncadd [#allocation4], %s22
      %s24 = sshll.u32 [#allocation3], 4
      %s25 = int_to_ptr.vmem [resolvable:$true] %s24
      %30 = dma.hbm_to_vmem [thread:$0]  %s1, 2048, %s25, [#allocation4], 128, 128, 8
    $region9: #{_forward.1} parent=1 // pred_fallthru
      _
    // Predicated region
    $region10: #{_forward.1} parent=1 // pred_check
      _
    $region11: #{_forward.1} parent=1 // pred_check_branch
      %32 = sbr.rel (0) target = $region13
    $region12: #{_forward.1} parent=1 // pred_region
      _
    $region13: #{_forward.1} parent=1 // pred_fallthru
      _
    // Predicated region
    $region14: #{_forward.1} parent=1 // pred_check
      _
    $region15: #{_forward.1} parent=1 // pred_check_branch
      %34 = sbr.rel (0) target = $region17
    $region16: #{_forward.1} parent=1 // pred_region
      %s36 = ssub.s32 8192, 8192
      %37 = vsyncadd [#allocation7], %s36
      %s38 = sshll.u32 [#allocation6], 4
      %s39 = int_to_ptr.vmem [resolvable:$true] %s38
      %44 = dma.hbm_to_vmem [thread:$0]  %s3, 8192, %s39, [#allocation7], 256, 256, 16
    $region17: #{_forward.1} parent=1 // pred_fallthru
      _
    // Predicated region
    $region18: #{_forward.1} parent=1 // pred_check
      _
    $region19: #{_forward.1} parent=1 // pred_check_branch
      %46 = sbr.rel (0) target = $region21
    $region20: #{_forward.1} parent=1 // pred_region
      %s48 = ssub.s32 64, 64
      %49 = vsyncadd [#allocation5], %s48
      %s51 = sshll.u32 %s4, 4
      %s52 = int_to_ptr.vmem [resolvable:$true] %s51
      %54 = dma.vmem_to_smem %s52, 64, [#allocation8], [#allocation5]
    $region21: #{_forward.1} parent=1 // pred_fallthru
      _
    // Predicated region
    $region22: #{_forward.1} parent=1 // pred_check
      _
    $region23: #{_forward.1} parent=1 // pred_check_branch
      %56 = sbr.rel (0) target = $region25
    $region24: #{_forward.1} parent=1 // pred_region
      %s58 = ssub.s32 2048, 2048
      %59 = vsyncadd [#allocation7], %s58
      %s60 = sshll.u32 [#allocation9], 4
      %s61 = int_to_ptr.vmem [resolvable:$true] %s60
      %66 = dma.hbm_to_vmem [thread:$0]  %s5, 2048, %s61, [#allocation7], 64, 64, 4
    $region25: #{_forward.1} parent=1 // pred_fallthru
      _
    // Predicated region
    $region26: #{_forward.1} parent=1 // pred_check
      _
    $region27: #{_forward.1} parent=1 // pred_check_branch
      %68 = sbr.rel (0) target = $region29
    $region28: #{_forward.1} parent=1 // pred_region
      %s70 = ssub.s32 2048, 2048
      %71 = vsyncadd [#allocation11], %s70
      %s72 = sshll.u32 [#allocation10], 4
      %s73 = int_to_ptr.vmem [resolvable:$true] %s72
      %78 = dma.hbm_to_vmem [thread:$0]  %s6, 2048, %s73, [#allocation11], 64, 64, 4
    $region29: #{_forward.1} parent=1 // pred_fallthru
      _
    // Predicated region
    $region30: #{_forward.1} parent=1 // pred_check
      _
    $region31: #{_forward.1} parent=1 // pred_check_branch
      %80 = sbr.rel (0) target = $region33
    $region32: #{_forward.1} parent=1 // pred_region
      _
    $region33: #{_forward.1} parent=1 // pred_fallthru
      _
    // Predicated region
    $region34: #{_forward.1} parent=1 // pred_check
      _
    $region35: #{_forward.1} parent=1 // pred_check_branch
      %82 = sbr.rel (0) target = $region37
    $region36: #{_forward.1} parent=1 // pred_region
      %83 = dma.done [#allocation4], 2048
    $region37: #{_forward.1} parent=1 // pred_fallthru
      _
    // Predicated region
    $region38: #{_forward.1} parent=1 // pred_check
      _
    $region39: #{_forward.1} parent=1 // pred_check_branch
      %85 = sbr.rel (0) target = $region41
    $region40: #{_forward.1} parent=1 // pred_region
      %86 = dma.done [#allocation7], 8192
    $region41: #{_forward.1} parent=1 // pred_fallthru
      _
    // Predicated region
    $region42: #{_forward.1} parent=1 // pred_check
      _
    $region43: #{_forward.1} parent=1 // pred_check_branch
      %88 = sbr.rel (0) target = $region45
    $region44: #{_forward.1} parent=1 // pred_region
      %89 = dma.done [#allocation5], 64
    $region45: #{_forward.1} parent=1 // pred_fallthru
      _
    // Predicated region
    $region46: #{_forward.1} parent=1 // pred_check
      _
    $region47: #{_forward.1} parent=1 // pred_check_branch
      %91 = sbr.rel (0) target = $region49
    $region48: #{_forward.1} parent=1 // pred_region
      %92 = dma.done [#allocation7], 2048
    $region49: #{_forward.1} parent=1 // pred_fallthru
      _
    // Predicated region
    $region50: #{_forward.1} parent=1 // pred_check
      _
    $region51: #{_forward.1} parent=1 // pred_check_branch
      %94 = sbr.rel (0) target = $region53
    $region52: #{_forward.1} parent=1 // pred_region
      %95 = dma.done [#allocation11], 2048
    $region53: #{_forward.1} parent=1 // pred_fallthru
      _
    %96 = sfence
    %p98 = scmp.eq.s32.totalorder 0, 0
    // Predicated region
    $region54: #{_forward.1} parent=1 // pred_check
      %p99 = pneg %p98
    $region55: #{_forward.1} parent=1 // pred_check_branch
      %101 = sbr.rel (%p99) target = $region57
    $region56: #{_forward.1} parent=1 // pred_region
      %102 = vst [vmem:[#allocation2] sm:$0xff] 0.0
      %103 = vst [vmem:[#allocation2 + $0x8] sm:$0xff] 0.0
    $region57: #{_forward.1} parent=1 // pred_fallthru
      _
    %v104 = vld [vmem:[%s0] sm:$0xff]
    %v105 = vlaneseq
    %v106 = vand.u32 %v105, 127
    %s107 = smul.u32 0, 128
    %v108 = vstv %s107
    %v109 = vadd.s32 %v106, %v108
    %vm110 = vcmp.lt.s32.totalorder %v109, 96
    %v111 = vsel %vm110, %v104, 0.0
    %v112 = vld [vmem:[#allocation2] sm:$0xff]
    %v113 = vld [vmem:[#allocation2 + $0x8] sm:$0xff]
    %v114 = vpack.c.bf16 %v111, %v111
    %v115 = vld [vmem:[#allocation3] sm:$0xff]
    %v116 = vld [vmem:[#allocation3 + $0x8] sm:$0xff]
    %v117 = vld [vmem:[#allocation3 + $0x10] sm:$0xff]
    %v118 = vld [vmem:[#allocation3 + $0x18] sm:$0xff]
    %v119 = vld [vmem:[#allocation3 + $0x20] sm:$0xff]
    %v120 = vld [vmem:[#allocation3 + $0x28] sm:$0xff]
    %v121 = vld [vmem:[#allocation3 + $0x30] sm:$0xff]
    %v122 = vld [vmem:[#allocation3 + $0x38] sm:$0xff]
    %v123 = vld [vmem:[#allocation3 + $0x40] sm:$0xff]
    %v124 = vld [vmem:[#allocation3 + $0x48] sm:$0xff]
    %v125 = vld [vmem:[#allocation3 + $0x50] sm:$0xff]
    %v126 = vld [vmem:[#allocation3 + $0x58] sm:$0xff]
    %v127 = vld [vmem:[#allocation3 + $0x60] sm:$0xff]
    %v128 = vld [vmem:[#allocation3 + $0x68] sm:$0xff]
    %v129 = vld [vmem:[#allocation3 + $0x70] sm:$0xff]
    %v130 = vld [vmem:[#allocation3 + $0x78] sm:$0xff]
    %v147 = vunpack.c.l.b16 %v115
    %v148 = vunpack.c.h.b16 %v115
    %v149 = vunpack.c.l.b16 %v116
    %v150 = vunpack.c.h.b16 %v116
    %v151 = vunpack.c.l.b16 %v117
    %v152 = vunpack.c.h.b16 %v117
    %v153 = vunpack.c.l.b16 %v118
    %v154 = vunpack.c.h.b16 %v118
    %v155 = vunpack.c.l.b16 %v119
    %v156 = vunpack.c.h.b16 %v119
    %v157 = vunpack.c.l.b16 %v120
    %v158 = vunpack.c.h.b16 %v120
    %v159 = vunpack.c.l.b16 %v121
    %v160 = vunpack.c.h.b16 %v121
    %v161 = vunpack.c.l.b16 %v122
    %v162 = vunpack.c.h.b16 %v122
    %v163 = vunpack.c.l.b16 %v123
    %v164 = vunpack.c.h.b16 %v123
    %v165 = vunpack.c.l.b16 %v124
    %v166 = vunpack.c.h.b16 %v124
    %v167 = vunpack.c.l.b16 %v125
    %v168 = vunpack.c.h.b16 %v125
    %v169 = vunpack.c.l.b16 %v126
    %v170 = vunpack.c.h.b16 %v126
    %v171 = vunpack.c.l.b16 %v127
    %v172 = vunpack.c.h.b16 %v127
    %v173 = vunpack.c.l.b16 %v128
    %v174 = vunpack.c.h.b16 %v128
    %v175 = vunpack.c.l.b16 %v129
    %v176 = vunpack.c.h.b16 %v129
    %v177 = vunpack.c.l.b16 %v130
    %v178 = vunpack.c.h.b16 %v130
    %v179 = vpack.c.b16 %v149, %v147
    %v180 = vpack.c.b16 %v150, %v148
    %v181 = vpack.c.b16 %v153, %v151
    %v182 = vpack.c.b16 %v154, %v152
    %v183 = vpack.c.b16 %v157, %v155
    %v184 = vpack.c.b16 %v158, %v156
    %v185 = vpack.c.b16 %v161, %v159
    %v186 = vpack.c.b16 %v162, %v160
    %v187 = vpack.c.b16 %v165, %v163
    %v188 = vpack.c.b16 %v166, %v164
    %v189 = vpack.c.b16 %v169, %v167
    %v190 = vpack.c.b16 %v170, %v168
    %v191 = vpack.c.b16 %v173, %v171
    %v192 = vpack.c.b16 %v174, %v172
    %v193 = vpack.c.b16 %v177, %v175
    %v194 = vpack.c.b16 %v178, %v176
    %211 = vmatprep.subr.bf16.mxu0 %v180
    %212 = vmatpush1.bf16.msra.mxu0 %v179
    %213 = vmatprep.subr.bf16.mxu0 %v182
    %214 = vmatpush1.bf16.msra.mxu0 %v181
    %215 = vmatprep.subr.bf16.mxu0 %v184
    %216 = vmatpush1.bf16.msra.mxu0 %v183
    %217 = vmatprep.subr.bf16.mxu0 %v186
    %218 = vmatpush1.bf16.msra.mxu0 %v185
    %219 = vmatprep.subr.bf16.mxu0 %v188
    %220 = vmatpush1.bf16.msra.mxu0 %v187
    %221 = vmatprep.subr.bf16.mxu0 %v190
    %222 = vmatpush1.bf16.msra.mxu0 %v189
    %223 = vmatprep.subr.bf16.mxu0 %v192
    %224 = vmatpush1.bf16.msra.mxu0 %v191
    %225 = vmatprep.subr.bf16.mxu0 %v194
    %226 = vmatpush1.bf16.msra.mxu0 %v193
    %227 = vmatprep.subr.bf16.mxu0 0
    %228 = vmatpush1.bf16.msra.mxu0 0
    %229 = vmatprep.subr.bf16.mxu0 0
    %230 = vmatpush1.bf16.msra.mxu0 0
    %231 = vmatprep.subr.bf16.mxu0 0
    %232 = vmatpush1.bf16.msra.mxu0 0
    %233 = vmatprep.subr.bf16.mxu0 0
    %234 = vmatpush1.bf16.msra.mxu0 0
    %235 = vmatprep.subr.bf16.mxu0 0
    %236 = vmatpush1.bf16.msra.mxu0 0
    %237 = vmatprep.subr.bf16.mxu0 0
    %238 = vmatpush1.bf16.msra.mxu0 0
    %239 = vmatprep.subr.bf16.mxu0 0
    %240 = vmatpush1.bf16.msra.mxu0 0
    %241 = vmatprep.subr.bf16.mxu0 0
    %242 = vmatpush1.bf16.msra.mxu0 0
    %243 = vmatprep.mubr.bf16.mxu0 0
    %244 = vmatmul.mubr.bf16.gmra.mrb[0].mxu0 %v114
    %v245 = vpop.f32.mrb[0].mxu0
    %v246 = vadd.f32 0.0, %v245
    %v247 = vpop.f32.mrb[0].mxu0
    %v248 = vadd.f32 0.0, %v247
    %v249 = vpop.f32.mrb[0].mxu0
    %v250 = vpop.f32.mrb[0].mxu0
    %251 = vdwg.mxu0
    %v252 = vadd.f32 %v112, %v246
    %v253 = vadd.f32 %v113, %v248
    %254 = vst [vmem:[#allocation2] sm:$0xff] %v252
    %255 = vst [vmem:[#allocation2 + $0x8] sm:$0xff] %v253
    // Predicated region
    $region58: #{_forward.1} parent=1 // pred_check
      %p256 = pneg %p98
    $region59: #{_forward.1} parent=1 // pred_check_branch
      %258 = sbr.rel (%p256) target = $region61
    $region60: #{_forward.1} parent=1 // pred_region
      %s259 = sld [smem:[#allocation8]]
      %s260 = sld [smem:[#allocation8 + $0x1]]
      %s261 = sld [smem:[#allocation8 + $0x80]]
      %s262 = sld [smem:[#allocation8 + $0x81]]
      %s263 = sld [smem:[#allocation8 + $0x100]]
      %s264 = sld [smem:[#allocation8 + $0x101]]
      %v265 = vld [vmem:[#allocation2] sm:$0xff]
      %v266 = vld [vmem:[#allocation2 + $0x8] sm:$0xff]
      %v267 = vld [vmem:[%s2] sm:$0x3]
      %v269 = vlaneseq
      %v270 = vshrl.u32 %v269, 7
      %v271 = vsub.s32 0, %v270
      %v272 = vrot.slane %v267, %v271
      %v273 = vlaneseq
      %v274 = vshrl.u32 %v273, 7
      %v275 = vsub.s32 1, %v274
      %v276 = vrot.slane %v267, %v275
      %v279 = vadd.f32 %v265, %v272
      %v280 = vadd.f32 %v266, %v276
      %v281 = vmax.f32 %v279, 0.0
      %v282 = vmax.f32 %v280, 0.0
      %v283 = vld [vmem:[#allocation6] sm:$0xff]
      %v284 = vld [vmem:[#allocation6 + $0x8] sm:$0xff]
      %v285 = vld [vmem:[#allocation6 + $0x10] sm:$0xff]
      %v286 = vld [vmem:[#allocation6 + $0x18] sm:$0xff]
      %v287 = vld [vmem:[#allocation6 + $0x20] sm:$0xff]
      %v288 = vld [vmem:[#allocation6 + $0x28] sm:$0xff]
      %v289 = vld [vmem:[#allocation6 + $0x30] sm:$0xff]
      %v290 = vld [vmem:[#allocation6 + $0x38] sm:$0xff]
      %v291 = vld [vmem:[#allocation6 + $0x40] sm:$0xff]
      %v292 = vld [vmem:[#allocation6 + $0x48] sm:$0xff]
      %v293 = vld [vmem:[#allocation6 + $0x50] sm:$0xff]
      %v294 = vld [vmem:[#allocation6 + $0x58] sm:$0xff]
      %v295 = vld [vmem:[#allocation6 + $0x60] sm:$0xff]
      %v296 = vld [vmem:[#allocation6 + $0x68] sm:$0xff]
      %v297 = vld [vmem:[#allocation6 + $0x70] sm:$0xff]
      %v298 = vld [vmem:[#allocation6 + $0x78] sm:$0xff]
      %v299 = vld [vmem:[#allocation6 + $0x80] sm:$0xff]
      %v300 = vld [vmem:[#allocation6 + $0x88] sm:$0xff]
      %v301 = vld [vmem:[#allocation6 + $0x90] sm:$0xff]
      %v302 = vld [vmem:[#allocation6 + $0x98] sm:$0xff]
      %v303 = vld [vmem:[#allocation6 + $0xa0] sm:$0xff]
      %v304 = vld [vmem:[#allocation6 + $0xa8] sm:$0xff]
      %v305 = vld [vmem:[#allocation6 + $0xb0] sm:$0xff]
      %v306 = vld [vmem:[#allocation6 + $0xb8] sm:$0xff]
      %v307 = vld [vmem:[#allocation6 + $0xc0] sm:$0xff]
      %v308 = vld [vmem:[#allocation6 + $0xc8] sm:$0xff]
      %v309 = vld [vmem:[#allocation6 + $0xd0] sm:$0xff]
      %v310 = vld [vmem:[#allocation6 + $0xd8] sm:$0xff]
      %v311 = vld [vmem:[#allocation6 + $0xe0] sm:$0xff]
      %v312 = vld [vmem:[#allocation6 + $0xe8] sm:$0xff]
      %v313 = vld [vmem:[#allocation6 + $0xf0] sm:$0xff]
      %v314 = vld [vmem:[#allocation6 + $0xf8] sm:$0xff]
      %v315 = vld [vmem:[#allocation6 + $0x100] sm:$0xff]
      %v316 = vld [vmem:[#allocation6 + $0x108] sm:$0xff]
      %v317 = vld [vmem:[#allocation6 + $0x110] sm:$0xff]
      %v318 = vld [vmem:[#allocation6 + $0x118] sm:$0xff]
      %v319 = vld [vmem:[#allocation6 + $0x120] sm:$0xff]
      %v320 = vld [vmem:[#allocation6 + $0x128] sm:$0xff]
      %v321 = vld [vmem:[#allocation6 + $0x130] sm:$0xff]
      %v322 = vld [vmem:[#allocation6 + $0x138] sm:$0xff]
      %v323 = vld [vmem:[#allocation6 + $0x140] sm:$0xff]
      %v324 = vld [vmem:[#allocation6 + $0x148] sm:$0xff]
      %v325 = vld [vmem:[#allocation6 + $0x150] sm:$0xff]
      %v326 = vld [vmem:[#allocation6 + $0x158] sm:$0xff]
      %v327 = vld [vmem:[#allocation6 + $0x160] sm:$0xff]
      %v328 = vld [vmem:[#allocation6 + $0x168] sm:$0xff]
      %v329 = vld [vmem:[#allocation6 + $0x170] sm:$0xff]
      %v330 = vld [vmem:[#allocation6 + $0x178] sm:$0xff]
      %v331 = vld [vmem:[#allocation6 + $0x180] sm:$0xff]
      %v332 = vld [vmem:[#allocation6 + $0x188] sm:$0xff]
      %v333 = vld [vmem:[#allocation6 + $0x190] sm:$0xff]
      %v334 = vld [vmem:[#allocation6 + $0x198] sm:$0xff]
      %v335 = vld [vmem:[#allocation6 + $0x1a0] sm:$0xff]
      %v336 = vld [vmem:[#allocation6 + $0x1a8] sm:$0xff]
      %v337 = vld [vmem:[#allocation6 + $0x1b0] sm:$0xff]
      %v338 = vld [vmem:[#allocation6 + $0x1b8] sm:$0xff]
      %v339 = vld [vmem:[#allocation6 + $0x1c0] sm:$0xff]
      %v340 = vld [vmem:[#allocation6 + $0x1c8] sm:$0xff]
      %v341 = vld [vmem:[#allocation6 + $0x1d0] sm:$0xff]
      %v342 = vld [vmem:[#allocation6 + $0x1d8] sm:$0xff]
      %v343 = vld [vmem:[#allocation6 + $0x1e0] sm:$0xff]
      %v344 = vld [vmem:[#allocation6 + $0x1e8] sm:$0xff]
      %v345 = vld [vmem:[#allocation6 + $0x1f0] sm:$0xff]
      %v346 = vld [vmem:[#allocation6 + $0x1f8] sm:$0xff]
      %347 = vmatprep.subr.mxu0 %v284
      %348 = vmatpush1.msra.mxu0 %v283
      %349 = vmatprep.subr.mxu0 %v286
      %350 = vmatpush1.msra.mxu0 %v285
      %351 = vmatprep.subr.mxu0 %v288
      %352 = vmatpush1.msra.mxu0 %v287
      %353 = vmatprep.subr.mxu0 %v290
      %354 = vmatpush1.msra.mxu0 %v289
      %355 = vmatprep.subr.mxu0 %v292
      %356 = vmatpush1.msra.mxu0 %v291
      %357 = vmatprep.subr.mxu0 %v294
      %358 = vmatpush1.msra.mxu0 %v293
      %359 = vmatprep.subr.mxu0 %v296
      %360 = vmatpush1.msra.mxu0 %v295
      %361 = vmatprep.subr.mxu0 %v298
      %362 = vmatpush1.msra.mxu0 %v297
      %363 = vmatprep.subr.mxu0 %v300
      %364 = vmatpush1.msra.mxu0 %v299
      %365 = vmatprep.subr.mxu0 %v302
      %366 = vmatpush1.msra.mxu0 %v301
      %367 = vmatprep.subr.mxu0 %v304
      %368 = vmatpush1.msra.mxu0 %v303
      %369 = vmatprep.subr.mxu0 %v306
      %370 = vmatpush1.msra.mxu0 %v305
      %371 = vmatprep.subr.mxu0 %v308
      %372 = vmatpush1.msra.mxu0 %v307
      %373 = vmatprep.subr.mxu0 %v310
      %374 = vmatpush1.msra.mxu0 %v309
      %375 = vmatprep.subr.mxu0 %v312
      %376 = vmatpush1.msra.mxu0 %v311
      %377 = vmatprep.subr.mxu0 %v314
      %378 = vmatpush1.msra.mxu0 %v313
      %379 = vmatprep.subr.mxu0 %v316
      %380 = vmatpush1.msra.mxu0 %v315
      %381 = vmatprep.subr.mxu0 %v318
      %382 = vmatpush1.msra.mxu0 %v317
      %383 = vmatprep.subr.mxu0 %v320
      %384 = vmatpush1.msra.mxu0 %v319
      %385 = vmatprep.subr.mxu0 %v322
      %386 = vmatpush1.msra.mxu0 %v321
      %387 = vmatprep.subr.mxu0 %v324
      %388 = vmatpush1.msra.mxu0 %v323
      %389 = vmatprep.subr.mxu0 %v326
      %390 = vmatpush1.msra.mxu0 %v325
      %391 = vmatprep.subr.mxu0 %v328
      %392 = vmatpush1.msra.mxu0 %v327
      %393 = vmatprep.subr.mxu0 %v330
      %394 = vmatpush1.msra.mxu0 %v329
      %395 = vmatprep.subr.mxu0 %v332
      %396 = vmatpush1.msra.mxu0 %v331
      %397 = vmatprep.subr.mxu0 %v334
      %398 = vmatpush1.msra.mxu0 %v333
      %399 = vmatprep.subr.mxu0 %v336
      %400 = vmatpush1.msra.mxu0 %v335
      %401 = vmatprep.subr.mxu0 %v338
      %402 = vmatpush1.msra.mxu0 %v337
      %403 = vmatprep.subr.mxu0 %v340
      %404 = vmatpush1.msra.mxu0 %v339
      %405 = vmatprep.subr.mxu0 %v342
      %406 = vmatpush1.msra.mxu0 %v341
      %407 = vmatprep.subr.mxu0 %v344
      %408 = vmatpush1.msra.mxu0 %v343
      %409 = vmatprep.subr.mxu0 %v346
      %410 = vmatpush1.msra.mxu0 %v345
      %411 = vmatprep.mubr.f32.mxu0 %v282
      %412 = vmatmul.mubr.f32.gmra.mrb[0].mxu0 %v281
      %v413 = vpop.f32.mrb[0].mxu0
      %v414 = vadd.f32 0.0, %v413
      %v415 = vpop.f32.mrb[0].mxu0
      %v416 = vadd.f32 0.0, %v415
      %417 = vdwg.mxu0
      %v418 = vstv %s259
      %v419 = vmul.f32 %v418, %v414
      %v420 = vmul.f32 %v418, %v416
      %v421 = vstv %s261
      %v422 = vadd.f32 %v419, %v421
      %v423 = vadd.f32 %v420, %v421
      %v424 = vstv %s263
      %v425 = vmul.f32 %v424, %v281
      %v426 = vmul.f32 %v424, %v282
      %v427 = vadd.f32 %v422, %v425
      %v428 = vadd.f32 %v423, %v426
      %v429 = vmax.f32 %v427, 0.0
      %v430 = vmax.f32 %v428, 0.0
      %v431 = vstv %s260
      %v432 = vmul.f32 %v431, %v414
      %v433 = vmul.f32 %v431, %v416
      %v434 = vstv %s262
      %v435 = vadd.f32 %v432, %v434
      %v436 = vadd.f32 %v433, %v434
      %v437 = vstv %s264
      %v438 = vmul.f32 %v437, %v281
      %v439 = vmul.f32 %v437, %v282
      %v440 = vadd.f32 %v435, %v438
      %v441 = vadd.f32 %v436, %v439
      %v442 = vmax.f32 %v440, 0.0
      %v443 = vmax.f32 %v441, 0.0
      %v444 = vpack.c.bf16 %v429, %v429
      %v445 = vpack.c.bf16 %v430, %v430
      %v446 = vld [vmem:[#allocation9] sm:$0xf]
      %v447 = vld [vmem:[#allocation9 + $0x4] sm:$0xf]
      %v448 = vld [vmem:[#allocation9 + $0x8] sm:$0xf]
      %v449 = vld [vmem:[#allocation9 + $0xc] sm:$0xf]
      %v450 = vld [vmem:[#allocation9 + $0x10] sm:$0xf]
      %v451 = vld [vmem:[#allocation9 + $0x14] sm:$0xf]
      %v452 = vld [vmem:[#allocation9 + $0x18] sm:$0xf]
      %v453 = vld [vmem:[#allocation9 + $0x1c] sm:$0xf]
      %v454 = vld [vmem:[#allocation9 + $0x20] sm:$0xf]
      %v455 = vld [vmem:[#allocation9 + $0x24] sm:$0xf]
      %v456 = vld [vmem:[#allocation9 + $0x28] sm:$0xf]
      %v457 = vld [vmem:[#allocation9 + $0x2c] sm:$0xf]
      %v458 = vld [vmem:[#allocation9 + $0x30] sm:$0xf]
      %v459 = vld [vmem:[#allocation9 + $0x34] sm:$0xf]
      %v460 = vld [vmem:[#allocation9 + $0x38] sm:$0xf]
      %v461 = vld [vmem:[#allocation9 + $0x3c] sm:$0xf]
      %v462 = vld [vmem:[#allocation9 + $0x40] sm:$0xf]
      %v463 = vld [vmem:[#allocation9 + $0x44] sm:$0xf]
      %v464 = vld [vmem:[#allocation9 + $0x48] sm:$0xf]
      %v465 = vld [vmem:[#allocation9 + $0x4c] sm:$0xf]
      %v466 = vld [vmem:[#allocation9 + $0x50] sm:$0xf]
      %v467 = vld [vmem:[#allocation9 + $0x54] sm:$0xf]
      %v468 = vld [vmem:[#allocation9 + $0x58] sm:$0xf]
      %v469 = vld [vmem:[#allocation9 + $0x5c] sm:$0xf]
      %v470 = vld [vmem:[#allocation9 + $0x60] sm:$0xf]
      %v471 = vld [vmem:[#allocation9 + $0x64] sm:$0xf]
      %v472 = vld [vmem:[#allocation9 + $0x68] sm:$0xf]
      %v473 = vld [vmem:[#allocation9 + $0x6c] sm:$0xf]
      %v474 = vld [vmem:[#allocation9 + $0x70] sm:$0xf]
      %v475 = vld [vmem:[#allocation9 + $0x74] sm:$0xf]
      %v476 = vld [vmem:[#allocation9 + $0x78] sm:$0xf]
      %v477 = vld [vmem:[#allocation9 + $0x7c] sm:$0xf]
      %v478 = vpack.c.bf16 %v442, %v442
      %v479 = vpack.c.bf16 %v443, %v443
      %v480 = vld [vmem:[#allocation10] sm:$0xf]
      %v481 = vld [vmem:[#allocation10 + $0x4] sm:$0xf]
      %v482 = vld [vmem:[#allocation10 + $0x8] sm:$0xf]
      %v483 = vld [vmem:[#allocation10 + $0xc] sm:$0xf]
      %v484 = vld [vmem:[#allocation10 + $0x10] sm:$0xf]
      %v485 = vld [vmem:[#allocation10 + $0x14] sm:$0xf]
      %v486 = vld [vmem:[#allocation10 + $0x18] sm:$0xf]
      %v487 = vld [vmem:[#allocation10 + $0x1c] sm:$0xf]
      %v488 = vld [vmem:[#allocation10 + $0x20] sm:$0xf]
      %v489 = vld [vmem:[#allocation10 + $0x24] sm:$0xf]
      %v490 = vld [vmem:[#allocation10 + $0x28] sm:$0xf]
      %v491 = vld [vmem:[#allocation10 + $0x2c] sm:$0xf]
      %v492 = vld [vmem:[#allocation10 + $0x30] sm:$0xf]
      %v493 = vld [vmem:[#allocation10 + $0x34] sm:$0xf]
      %v494 = vld [vmem:[#allocation10 + $0x38] sm:$0xf]
      %v495 = vld [vmem:[#allocation10 + $0x3c] sm:$0xf]
      %v496 = vld [vmem:[#allocation10 + $0x40] sm:$0xf]
      %v497 = vld [vmem:[#allocation10 + $0x44] sm:$0xf]
      %v498 = vld [vmem:[#allocation10 + $0x48] sm:$0xf]
      %v499 = vld [vmem:[#allocation10 + $0x4c] sm:$0xf]
      %v500 = vld [vmem:[#allocation10 + $0x50] sm:$0xf]
      %v501 = vld [vmem:[#allocation10 + $0x54] sm:$0xf]
      %v502 = vld [vmem:[#allocation10 + $0x58] sm:$0xf]
      %v503 = vld [vmem:[#allocation10 + $0x5c] sm:$0xf]
      %v504 = vld [vmem:[#allocation10 + $0x60] sm:$0xf]
      %v505 = vld [vmem:[#allocation10 + $0x64] sm:$0xf]
      %v506 = vld [vmem:[#allocation10 + $0x68] sm:$0xf]
      %v507 = vld [vmem:[#allocation10 + $0x6c] sm:$0xf]
      %v508 = vld [vmem:[#allocation10 + $0x70] sm:$0xf]
      %v509 = vld [vmem:[#allocation10 + $0x74] sm:$0xf]
      %v510 = vld [vmem:[#allocation10 + $0x78] sm:$0xf]
      %v511 = vld [vmem:[#allocation10 + $0x7c] sm:$0xf]
      %v544 = vunpack.c.l.b16 %v480
      %v545 = vunpack.c.l.b16 %v481
      %v546 = vunpack.c.l.b16 %v482
      %v547 = vunpack.c.l.b16 %v483
      %v548 = vunpack.c.l.b16 %v484
      %v549 = vunpack.c.l.b16 %v485
      %v550 = vunpack.c.l.b16 %v486
      %v551 = vunpack.c.l.b16 %v487
      %v552 = vunpack.c.l.b16 %v488
      %v553 = vunpack.c.l.b16 %v489
      %v554 = vunpack.c.l.b16 %v490
      %v555 = vunpack.c.l.b16 %v491
      %v556 = vunpack.c.l.b16 %v492
      %v557 = vunpack.c.l.b16 %v493
      %v558 = vunpack.c.l.b16 %v494
      %v559 = vunpack.c.l.b16 %v495
      %v560 = vunpack.c.l.b16 %v496
      %v561 = vunpack.c.l.b16 %v497
      %v562 = vunpack.c.l.b16 %v498
      %v563 = vunpack.c.l.b16 %v499
      %v564 = vunpack.c.l.b16 %v500
      %v565 = vunpack.c.l.b16 %v501
      %v566 = vunpack.c.l.b16 %v502
      %v567 = vunpack.c.l.b16 %v503
      %v568 = vunpack.c.l.b16 %v504
      %v569 = vunpack.c.l.b16 %v505
      %v570 = vunpack.c.l.b16 %v506
      %v571 = vunpack.c.l.b16 %v507
      %v572 = vunpack.c.l.b16 %v508
      %v573 = vunpack.c.l.b16 %v509
      %v574 = vunpack.c.l.b16 %v510
      %v575 = vunpack.c.l.b16 %v511
      %v576 = vpack.c.b16 %v545, %v544
      %v577 = vpack.c.b16 %v547, %v546
      %v578 = vpack.c.b16 %v549, %v548
      %v579 = vpack.c.b16 %v551, %v550
      %v580 = vpack.c.b16 %v553, %v552
      %v581 = vpack.c.b16 %v555, %v554
      %v582 = vpack.c.b16 %v557, %v556
      %v583 = vpack.c.b16 %v559, %v558
      %v584 = vpack.c.b16 %v561, %v560
      %v585 = vpack.c.b16 %v563, %v562
      %v586 = vpack.c.b16 %v565, %v564
      %v587 = vpack.c.b16 %v567, %v566
      %v588 = vpack.c.b16 %v569, %v568
      %v589 = vpack.c.b16 %v571, %v570
      %v590 = vpack.c.b16 %v573, %v572
      %v591 = vpack.c.b16 %v575, %v574
      %608 = vmatprep.subr.bf16.mxu0 0
      %609 = vmatpush1.bf16.msra.mxu0 %v576
      %610 = vmatprep.subr.bf16.mxu0 0
      %611 = vmatpush1.bf16.msra.mxu0 %v577
      %612 = vmatprep.subr.bf16.mxu0 0
      %613 = vmatpush1.bf16.msra.mxu0 %v578
      %614 = vmatprep.subr.bf16.mxu0 0
      %615 = vmatpush1.bf16.msra.mxu0 %v579
      %616 = vmatprep.subr.bf16.mxu0 0
      %617 = vmatpush1.bf16.msra.mxu0 %v580
      %618 = vmatprep.subr.bf16.mxu0 0
      %619 = vmatpush1.bf16.msra.mxu0 %v581
      %620 = vmatprep.subr.bf16.mxu0 0
      %621 = vmatpush1.bf16.msra.mxu0 %v582
      %622 = vmatprep.subr.bf16.mxu0 0
      %623 = vmatpush1.bf16.msra.mxu0 %v583
      %624 = vmatprep.subr.bf16.mxu0 0
      %625 = vmatpush1.bf16.msra.mxu0 %v584
      %626 = vmatprep.subr.bf16.mxu0 0
      %627 = vmatpush1.bf16.msra.mxu0 %v585
      %628 = vmatprep.subr.bf16.mxu0 0
      %629 = vmatpush1.bf16.msra.mxu0 %v586
      %630 = vmatprep.subr.bf16.mxu0 0
      %631 = vmatpush1.bf16.msra.mxu0 %v587
      %632 = vmatprep.subr.bf16.mxu0 0
      %633 = vmatpush1.bf16.msra.mxu0 %v588
      %634 = vmatprep.subr.bf16.mxu0 0
      %635 = vmatpush1.bf16.msra.mxu0 %v589
      %636 = vmatprep.subr.bf16.mxu0 0
      %637 = vmatpush1.bf16.msra.mxu0 %v590
      %638 = vmatprep.subr.bf16.mxu0 0
      %639 = vmatpush1.bf16.msra.mxu0 %v591
      %640 = vmatprep.mubr.bf16.mxu0 %v479
      %641 = vmatmul.mubr.bf16.gmra.mrb[0].mxu0 %v478
      %v642 = vpop.f32.mrb[0].mxu0
      %v643 = vadd.f32 0.0, %v642
      %v644 = vpop.f32.mrb[0].mxu0
      %v645 = vpop.f32.mrb[0].mxu0
      %v646 = vpop.f32.mrb[0].mxu0
      %647 = vdwg.mxu0
      %v680 = vunpack.c.l.b16 %v446
      %v681 = vunpack.c.l.b16 %v447
      %v682 = vunpack.c.l.b16 %v448
      %v683 = vunpack.c.l.b16 %v449
      %v684 = vunpack.c.l.b16 %v450
      %v685 = vunpack.c.l.b16 %v451
      %v686 = vunpack.c.l.b16 %v452
      %v687 = vunpack.c.l.b16 %v453
      %v688 = vunpack.c.l.b16 %v454
      %v689 = vunpack.c.l.b16 %v455
      %v690 = vunpack.c.l.b16 %v456
      %v691 = vunpack.c.l.b16 %v457
      %v692 = vunpack.c.l.b16 %v458
      %v693 = vunpack.c.l.b16 %v459
      %v694 = vunpack.c.l.b16 %v460
      %v695 = vunpack.c.l.b16 %v461
      %v696 = vunpack.c.l.b16 %v462
      %v697 = vunpack.c.l.b16 %v463
      %v698 = vunpack.c.l.b16 %v464
      %v699 = vunpack.c.l.b16 %v465
      %v700 = vunpack.c.l.b16 %v466
      %v701 = vunpack.c.l.b16 %v467
      %v702 = vunpack.c.l.b16 %v468
      %v703 = vunpack.c.l.b16 %v469
      %v704 = vunpack.c.l.b16 %v470
      %v705 = vunpack.c.l.b16 %v471
      %v706 = vunpack.c.l.b16 %v472
      %v707 = vunpack.c.l.b16 %v473
      %v708 = vunpack.c.l.b16 %v474
      %v709 = vunpack.c.l.b16 %v475
      %v710 = vunpack.c.l.b16 %v476
      %v711 = vunpack.c.l.b16 %v477
      %v712 = vpack.c.b16 %v681, %v680
      %v713 = vpack.c.b16 %v683, %v682
      %v714 = vpack.c.b16 %v685, %v684
      %v715 = vpack.c.b16 %v687, %v686
      %v716 = vpack.c.b16 %v689, %v688
      %v717 = vpack.c.b16 %v691, %v690
      %v718 = vpack.c.b16 %v693, %v692
      %v719 = vpack.c.b16 %v695, %v694
      %v720 = vpack.c.b16 %v697, %v696
      %v721 = vpack.c.b16 %v699, %v698
      %v722 = vpack.c.b16 %v701, %v700
      %v723 = vpack.c.b16 %v703, %v702
      %v724 = vpack.c.b16 %v705, %v704
      %v725 = vpack.c.b16 %v707, %v706
      %v726 = vpack.c.b16 %v709, %v708
      %v727 = vpack.c.b16 %v711, %v710
      %744 = vmatprep.subr.bf16.mxu0 0
      %745 = vmatpush1.bf16.msra.mxu0 %v712
      %746 = vmatprep.subr.bf16.mxu0 0
      %747 = vmatpush1.bf16.msra.mxu0 %v713
      %748 = vmatprep.subr.bf16.mxu0 0
      %749 = vmatpush1.bf16.msra.mxu0 %v714
      %750 = vmatprep.subr.bf16.mxu0 0
      %751 = vmatpush1.bf16.msra.mxu0 %v715
      %752 = vmatprep.subr.bf16.mxu0 0
      %753 = vmatpush1.bf16.msra.mxu0 %v716
      %754 = vmatprep.subr.bf16.mxu0 0
      %755 = vmatpush1.bf16.msra.mxu0 %v717
      %756 = vmatprep.subr.bf16.mxu0 0
      %757 = vmatpush1.bf16.msra.mxu0 %v718
      %758 = vmatprep.subr.bf16.mxu0 0
      %759 = vmatpush1.bf16.msra.mxu0 %v719
      %760 = vmatprep.subr.bf16.mxu0 0
      %761 = vmatpush1.bf16.msra.mxu0 %v720
      %762 = vmatprep.subr.bf16.mxu0 0
      %763 = vmatpush1.bf16.msra.mxu0 %v721
      %764 = vmatprep.subr.bf16.mxu0 0
      %765 = vmatpush1.bf16.msra.mxu0 %v722
      %766 = vmatprep.subr.bf16.mxu0 0
      %767 = vmatpush1.bf16.msra.mxu0 %v723
      %768 = vmatprep.subr.bf16.mxu0 0
      %769 = vmatpush1.bf16.msra.mxu0 %v724
      %770 = vmatprep.subr.bf16.mxu0 0
      %771 = vmatpush1.bf16.msra.mxu0 %v725
      %772 = vmatprep.subr.bf16.mxu0 0
      %773 = vmatpush1.bf16.msra.mxu0 %v726
      %774 = vmatprep.subr.bf16.mxu0 0
      %775 = vmatpush1.bf16.msra.mxu0 %v727
      %776 = vmatprep.mubr.bf16.mxu0 %v445
      %777 = vmatmul.mubr.bf16.gmra.mrb[0].mxu0 %v444
      %v778 = vpop.f32.mrb[0].mxu0
      %v779 = vadd.f32 %v643, %v778
      %v780 = vpop.f32.mrb[0].mxu0
      %v781 = vpop.f32.mrb[0].mxu0
      %v782 = vpop.f32.mrb[0].mxu0
      %783 = vdwg.mxu0
      %v784 = vld [vmem:[%s7] sm:$0x1]
      %v786 = vlaneseq
      %v787 = vshrl.u32 %v786, 7
      %v788 = vsub.s32 0, %v787
      %v789 = vrot.slane %v784, %v788
      %v791 = vadd.f32 %v779, %v789
      %792 = vst [vmem:[%s8] sm:$0xff] %v791
    $region61: #{_forward.1} parent=1 // pred_fallthru
      _
    // Predicated region
    $region62: #{_forward.1} parent=1 // pred_check
      _
    $region63: #{_forward.1} parent=1 // pred_check_branch
      %794 = sbr.rel (0) target = $region65
    $region64: #{_forward.1} parent=1 // pred_region
      _
    $region65: #{_forward.1} parent=1 // pred_fallthru
      _
    // Predicated region
    $region66: #{_forward.1} parent=1 // pred_check
      _
    $region67: #{_forward.1} parent=1 // pred_check_branch
      %796 = sbr.rel (0) target = $region69
    $region68: #{_forward.1} parent=1 // pred_region
      _
    $region69: #{_forward.1} parent=1 // pred_fallthru
      _
    %797 = vsyncpa [#allocation4], 1
    %798 = vsyncpa [#allocation7], 1
    %799 = vsyncpa [#allocation11], 1
    %800 = vsyncpa [#allocation5], 1

</llo_original>
